<compile_context>
chip_gen: v7x
topology: tpu7x:2x2x1
jax: 0.10.0
libtpu: 0.0.40
codegen_flags: <defaults>
</compile_context>

<pallas_src>
import functools
import math

import jax
import jax.numpy as jnp
from jax.experimental import pallas as pl
from jax.experimental.pallas import tpu as pltpu

EPS_LOG = math.log(1e-6)


# --------------------------------------------------------------------------
# Kernels
# --------------------------------------------------------------------------
def _mel_shift_lane_kernel(scal_ref, x_ref, o_ref, *, slab_len, needs_mod):
    # scal_ref: SMEM int32[3] = [lane roll in [0, W), valid_lo, valid_lo + slab_len]
    # x_ref / o_ref: (block_rows, W) VMEM blocks; each row holds W // slab_len
    #   contiguous (M, T) slabs, slab_len = M*T.  One XLU lane rotate + one VPU
    #   select per block; stores are lane-dense (W is a multiple of 128).
    x = x_ref[...]
    rolled = pltpu.roll(x, scal_ref[0], axis=1)                 # XLU lane rotate
    lanes = jax.lax.broadcasted_iota(jnp.int32, x.shape, 1)
    if needs_mod:                                               # position within slab
        lanes = lanes % slab_len
    valid = (lanes >= scal_ref[1]) & (lanes < scal_ref[2])
    o_ref[...] = jnp.where(valid, rolled, jnp.asarray(EPS_LOG, x.dtype))


def _mel_shift_timetile_kernel(scal_ref, x_ref, o_ref):
    # scal_ref: SMEM int32[3] = [shift, shift, shift + M]
    # x_ref / o_ref: (M, T_tile) VMEM blocks; the mel axis is fully resident.
    # The roll over mel rows is a one-hot permutation matmul (MXU) -- avoids a
    # dynamic sublane rotate and is free filler in this memory-bound regime.
    x = x_ref[...]
    m = x.shape[0]
    i = jax.lax.broadcasted_iota(jnp.int32, (m, m), 0)          # output mel row
    j = jax.lax.broadcasted_iota(jnp.int32, (m, m), 1)          # source mel row
    perm = ((i - j - scal_ref[0]) % m == 0).astype(x.dtype)     # roll(x, shift, 0)
    rolled = jnp.dot(perm, x, preferred_element_type=jnp.float32).astype(x.dtype)
    rows = jax.lax.broadcasted_iota(jnp.int32, x.shape, 0)
    valid = (rows >= scal_ref[1]) & (rows < scal_ref[2])
    o_ref[...] = jnp.where(valid, rolled, jnp.asarray(EPS_LOG, x.dtype))


# --------------------------------------------------------------------------
# Sizing helpers
# --------------------------------------------------------------------------
@functools.lru_cache(maxsize=1)
def _vmem_limit_bytes():
    """Scoped-VMEM budget: above the conservative defaults, below physical."""
    try:
        cap = getattr(pltpu.get_tpu_info(), "vmem_capacity_bytes", None)
    except Exception:
        cap = None
    if not cap:
        return 32 << 20                      # safe everywhere (v7x default)
    return int(min(cap * 3 // 4, 48 << 20))  # <=48 MiB: headroom even on v7x (64 MiB)


def _round_up(v, m):
    return -(-v // m) * m


def _pack_factor(lane_len, n_rows):
    """Slabs packed per kernel row so the lane width k*L is 128-aligned, >=512."""
    if n_rows <= 0:
        return 1
    k = 128 // math.gcd(lane_len, 128)
    if n_rows % k != 0:
        return 1                             # cannot pack cleanly; still correct
    while k * lane_len < 512 and n_rows % (2 * k) == 0:
        k *= 2
    return k


def _choose_block_rows(n_rows, row_bytes, pack_mult, target_bytes, min_grid_steps=8):
    """Row-block size for the lane path: ~target_bytes blocks, rounded to the
    dtype's sublane packing multiple, keeping >= min_grid_steps grid steps when
    the problem is large enough (v7x two-core split / pipeline overlap)."""
    if n_rows <= pack_mult:
        return n_rows                        # full extent along rows (legal)
    by_bytes = max(pack_mult,
                   (target_bytes // max(1, row_bytes)) // pack_mult * pack_mult)
    by_split = max(pack_mult, _round_up(-(-n_rows // min_grid_steps), pack_mult))
    return min(min(by_bytes, by_split), n_rows)


def _choose_t_tile(m, t, itemsize, target_bytes, force_small):
    if force_small:
        return 128 if (t % 128 == 0 and t > 128) else t
    if m * t * itemsize <= target_bytes or t % 128 != 0:
        # TODO(synk): ragged time tiles (pl.BoundedSlice) for huge M*T with T not
        # a multiple of 128; full-T blocks are used instead (may need more VMEM).
        return t
    per_col = m * itemsize
    return min(t, max(128, (target_bytes // per_col) // 128 * 128))


# --------------------------------------------------------------------------
# Wrapper
# --------------------------------------------------------------------------
@functools.partial(jax.jit, static_argnames=("force_time_tiling",))
def mel_pitch_shift(x, shift, *, force_time_tiling=False):
    """MelPitchShift forward for a given integer shift (runtime scalar)."""
    assert jnp.issubdtype(x.dtype, jnp.floating), "float dtypes only (log(eps) fill)"
    orig_shape = x.shape
    M, T = orig_shape[-2], orig_shape[-1]
    L = M * T
    N = 1
    for d in orig_shape[:-2]:
        N *= d

    itemsize = jnp.dtype(x.dtype).itemsize
    pack_mult = {4: 8, 2: 16, 1: 32}.get(itemsize, 8)
    limit = _vmem_limit_bytes()
    target = max(1 << 20, limit // 5)        # per-block bytes (4x when double-buffered)

    s = jnp.asarray(shift, jnp.int32)
    total_bytes = 2 * N * L * itemsize       # read + write

    # ---- lane-roll path sizing ------------------------------------------------
    k = _pack_factor(L, N)                   # slabs per packed row
    W = k * L                                # lane width (multiple of 128 when packed)
    Np = N // k
    row_bytes = W * itemsize
    min_lane_block = min(Np, pack_mult) * row_bytes
    use_time_tiling = force_time_tiling or (min_lane_block > target)

    if not use_time_tiling:
        x2 = x.reshape(Np, W)                # free: (M, T) slabs are row-major contiguous
        lo = s * T
        scalars = jnp.stack([lo % W, lo, lo + L]).astype(jnp.int32)
        block_rows = _choose_block_rows(Np, row_bytes, pack_mult, target)
        kern = functools.partial(_mel_shift_lane_kernel,
                                 slab_len=L, needs_mod=(k > 1))
        out = pl.pallas_call(
            kern,
            out_shape=jax.ShapeDtypeStruct((Np, W), x.dtype),
            grid_spec=pltpu.PrefetchScalarGridSpec(
                num_scalar_prefetch=1,
                grid=(pl.cdiv(Np, block_rows),),
                in_specs=[pl.BlockSpec((block_rows, W), lambda i, s_ref: (i, 0))],
                out_specs=pl.BlockSpec((block_rows, W), lambda i, s_ref: (i, 0)),
            ),
            compiler_params=pltpu.CompilerParams(
                dimension_semantics=("parallel",),
                vmem_limit_bytes=limit),
            cost_estimate=pl.CostEstimate(
                flops=0, transcendentals=0, bytes_accessed=total_bytes),
        )(scalars, x2)
        return out.reshape(orig_shape)

    # ---- time-tiled fallback (very large M*T slabs, or forced for testing) ----
    t_tile = _choose_t_tile(M, T, itemsize, target, force_time_tiling)
    x3 = x.reshape(N, M, T)
    scalars = jnp.stack([s, s, s + M]).astype(jnp.int32)
    out = pl.pallas_call(
        _mel_shift_timetile_kernel,
        out_shape=jax.ShapeDtypeStruct((N, M, T), x.dtype),
        grid_spec=pltpu.PrefetchScalarGridSpec(
            num_scalar_prefetch=1,
            grid=(N, pl.cdiv(T, t_tile)),
            in_specs=[pl.BlockSpec((pl.Squeezed(), M, t_tile),
                                   lambda n, t, s_ref: (n, 0, t))],
            out_specs=pl.BlockSpec((pl.Squeezed(), M, t_tile),
                                   lambda n, t, s_ref: (n, 0, t)),
        ),
        compiler_params=pltpu.CompilerParams(
            dimension_semantics=("parallel", "parallel"),
            vmem_limit_bytes=limit),
        cost_estimate=pl.CostEstimate(
            flops=2 * N * M * M * T, transcendentals=0,
            bytes_accessed=total_bytes),
    )(scalars, x3)
    return out.reshape(orig_shape)


# --------------------------------------------------------------------------
# Pure-JAX reference mirroring the PyTorch forward exactly
# --------------------------------------------------------------------------
def _reference(x, shift):
    out = jnp.roll(x, shift, axis=-2)
    M = x.shape[-2]
    row = jnp.arange(M).reshape((1,) * (x.ndim - 2) + (M, 1))
    if shift > 0:
        mask = row < shift
    elif shift < 0:
        mask = row >= (M + shift)
    else:
        mask = jnp.zeros_like(row, dtype=bool)
    return jnp.where(mask, jnp.asarray(EPS_LOG, x.dtype), out)


if __name__ == "__main__":
    key = jax.random.PRNGKey(0)

    # Primary lane-roll path (L = M*T = 256 -> packed to 512 lane-dense lanes).
    B, C, M, T = 2, 4, 16, 16
    x = jax.random.normal(key, (B, C, M, T), dtype=jnp.float32)
    for shift in (5, -3, 0, 8, -8):          # stand-ins for rd.randint(-8, 8)
        y = jax.block_until_ready(mel_pitch_shift(x, shift))
        assert y.shape == x.shape and y.dtype == x.dtype
        assert jnp.allclose(y, _reference(x, shift)), f"lane path mismatch shift={shift}"

    # Large-slab fallback (time-tiled blocks + permutation-matmul roll), forced
    # at a small shape so both code paths are exercised on-device.
    x2 = jax.random.normal(jax.random.PRNGKey(1), (2, 3, 16, 256), dtype=jnp.float32)
    for shift in (4, -6):
        y2 = jax.block_until_ready(
            mel_pitch_shift(x2, shift, force_time_tiling=True))
        assert jnp.allclose(y2, _reference(x2, shift)), f"time-tiled mismatch shift={shift}"

    print("KERNEL_OK")
</pallas_src>

<mosaic_0001>
module attributes {stable_mosaic.version = 11 : i64} {
  func.func @_mel_shift_lane_kernel(%arg0: i32, %arg1: memref<3xi32, #tpu.memory_space<smem>>, %arg2: memref<4x512xf32, #tpu.memory_space<vmem>>, %arg3: memref<4x512xf32, #tpu.memory_space<vmem>>) attributes {dimension_semantics = [#tpu.dimension_semantics<parallel>], iteration_bounds = array<i64: 1>, scalar_prefetch = 1 : i64, scratch_operands = 0 : i64, tpu.core_type = #tpu.core_type<tc>, window_params = [{transform_indices = @transform_0, window_bounds = array<i64: 4, 512>}, {transform_indices = @transform_1, window_bounds = array<i64: 4, 512>}]} {
    %c0 = arith.constant 0 : index
    %c0_0 = arith.constant 0 : index
    %0 = vector.load %arg2[%c0, %c0_0] : memref<4x512xf32, #tpu.memory_space<vmem>>, vector<4x512xf32>
    %c0_1 = arith.constant 0 : index
    %1 = memref.load %arg1[%c0_1] : memref<3xi32, #tpu.memory_space<smem>>
    %2 = tpu.dynamic_rotate %0 by %1 dim 1 : vector<4x512xf32>, i32 -> vector<4x512xf32>
    %3 = tpu.iota {dimensions = array<i32: 1>} : vector<4x512xi32>
    %c256_i32 = arith.constant 256 : i32
    %c0_i32 = arith.constant 0 : i32
    %4 = arith.cmpi eq, %c256_i32, %c0_i32 : i32
    %c1_i32 = arith.constant 1 : i32
    %5 = arith.select %4, %c1_i32, %c256_i32 : i32
    %6 = vector.broadcast %5 : i32 to vector<4x512xi32>
    %7 = arith.remsi %3, %6 : vector<4x512xi32>
    %c0_i32_2 = arith.constant 0 : i32
    %8 = vector.broadcast %c0_i32_2 : i32 to vector<4x512xi32>
    %9 = arith.cmpi ne, %7, %8 : vector<4x512xi32>
    %c0_i32_3 = arith.constant 0 : i32
    %10 = vector.broadcast %c0_i32_3 : i32 to vector<4x512xi32>
    %11 = arith.cmpi slt, %7, %10 : vector<4x512xi32>
    %c0_i32_4 = arith.constant 0 : i32
    %12 = arith.cmpi slt, %5, %c0_i32_4 : i32
    %13 = vector.broadcast %12 : i1 to vector<4x512xi1>
    %14 = vector.broadcast %13 : vector<4x512xi1> to vector<4x512xi1>
    %15 = arith.xori %11, %14 : vector<4x512xi1>
    %16 = arith.andi %15, %9 : vector<4x512xi1>
    %17 = vector.broadcast %5 : i32 to vector<4x512xi32>
    %18 = arith.addi %7, %17 : vector<4x512xi32>
    %19 = arith.select %16, %18, %7 : vector<4x512xi1>, vector<4x512xi32>
    %c1 = arith.constant 1 : index
    %20 = memref.load %arg1[%c1] : memref<3xi32, #tpu.memory_space<smem>>
    %21 = vector.broadcast %20 : i32 to vector<4x512xi32>
    %22 = arith.cmpi sge, %19, %21 : vector<4x512xi32>
    %c2 = arith.constant 2 : index
    %23 = memref.load %arg1[%c2] : memref<3xi32, #tpu.memory_space<smem>>
    %24 = vector.broadcast %23 : i32 to vector<4x512xi32>
    %25 = arith.cmpi slt, %19, %24 : vector<4x512xi32>
    %26 = arith.andi %22, %25 : vector<4x512xi1>
    %cst = arith.constant -13.8155107 : f32
    %27 = vector.broadcast %cst : f32 to vector<4x512xf32>
    %28 = arith.select %26, %2, %27 : vector<4x512xi1>, vector<4x512xf32>
    %c0_5 = arith.constant 0 : index
    %c0_6 = arith.constant 0 : index
    %29 = vector.load %arg3[%c0_5, %c0_6] : memref<4x512xf32, #tpu.memory_space<vmem>>, vector<4x512xf32>
    tpu.vector_store %arg3[%c0_5, %c0_6], %28 {strides = array<i32>} : memref<4x512xf32, #tpu.memory_space<vmem>>, vector<4x512xf32>,
    return
  }
  func.func @transform_0(%arg0: i32, %arg1: memref<3xi32, #tpu.memory_space<smem>>) -> (i32, i32) {
    %c0_i32 = arith.constant 0 : i32
    %c0_i32_0 = arith.constant 0 : i32
    return %arg0, %c0_i32 : i32, i32
  }
  func.func @transform_1(%arg0: i32, %arg1: memref<3xi32, #tpu.memory_space<smem>>) -> (i32, i32) {
    %c0_i32 = arith.constant 0 : i32
    %c0_i32_0 = arith.constant 0 : i32
    return %arg0, %c0_i32 : i32, i32
  }
}

</mosaic_0001>

<llo_original>
// kernel: mel_pitch_shift.1
$region0: #{mel_pitch_shift.1}
  #allocation0 [shape = 'u32[]', space=smem, size = 0x4, offset = 0x4, fixed_abs, tag = 'smem constant byte address 0x4 - core index']
  #allocation1 [shape = 'u32[144,128]{1,0:T(1,128)}', space=vmem, size = 0x12000, scoped, tag = 'internal scratch']
  #allocation2 [shape = 's32[1]{0}', space=sflag, size = 0x4, scoped, tag = 'scoped memory for mel_pitch_shift.1']
  #allocation3 [shape = 'u8[512]{0}', space=smem, size = 0x200, scoped, tag = 'prefetched SMEM operand 0']
  %s0 = inlined_call_operand.vmem [shape: s32[3], index: 0, kind: input, shape index: {}]
  %s1 = inlined_call_operand.vmem [shape: f32[4,512], index: 1, kind: input, shape index: {}]
  %s2 = inlined_call_operand.vmem [shape: f32[4,512], index: 2, kind: output, shape index: {}]
  %s3 = sld [smem:[#allocation0]]
  $region14: #{mel_pitch_shift.1} parent=0
    _
  %s5 = ssub.s32 1, %s3
  %s6 = scalar_select 0, %s5, %s3
  %s7 = sshll.u32 %s0, 4
  %s8 = int_to_ptr.vmem [resolvable:$true] %s7
  %10 = dma.vmem_to_smem %s8, 16, [#allocation3], [#allocation2]
  %11 = dma.done [#allocation2], 16
  %12 = sfence
  // Predicated region
  $region2: #{mel_pitch_shift.1} parent=0 // pred_check
    _
  $region3: #{mel_pitch_shift.1} parent=0 // pred_check_branch
    %14 = sbr.rel (0) target = $region5
  $region4: #{mel_pitch_shift.1} parent=0 // pred_region
    _
  $region5: #{mel_pitch_shift.1} parent=0 // pred_fallthru
    _
  %v15 = vld [vmem:[%s1] sm:$0xff]
  %v16 = vld [vmem:[%s1 + $0x8] sm:$0xff]
  %s17 = sld [smem:[#allocation3]]
  %v20 = vcombine.high %v15, %v15
  %v21 = vcombine.high %v16, %v16
  %s24 = sand.u32 %s17, 511
  %s25 = sand.u32 %s24, 127
  %s26 = sshrl.u32 %s24, 7
  %27 = vrot.lane.b32.xlu0 %v15, %s25
  %v28 = vpop.permute.xlu0 %27
  %29 = vrot.lane.b32.xlu0 %v20, %s25
  %v30 = vpop.permute.xlu0 %29
  %31 = vrot.lane.b32.xlu0 %v16, %s25
  %v32 = vpop.permute.xlu0 %31
  %33 = vrot.lane.b32.xlu0 %v21, %s25
  %v34 = vpop.permute.xlu0 %33
  %v35 = vstv %s25
  %v36 = vlaneseq
  %v37 = vand.u32 %v36, 127
  %vm38 = vcmp.lt.s32.totalorder %v37, %v35
  %v39 = vsel %vm38, %v32, %v34
  %v40 = vsel %vm38, %v30, %v32
  %v41 = vsel %vm38, %v28, %v30
  %v42 = vsel %vm38, %v34, %v28
  %s43 = sand.u32 %s26, 1
  %v44 = vstv %s43
  %vm45 = vcmp.ne.s32.totalorder %v44, 0
  %v46 = vsel %vm45, %v39, %v42
  %v47 = vsel %vm45, %v42, %v41
  %v48 = vsel %vm45, %v41, %v40
  %v49 = vsel %vm45, %v40, %v39
  %s50 = sand.u32 %s26, 2
  %v51 = vstv %s50
  %vm52 = vcmp.ne.s32.totalorder %v51, 0
  %v53 = vsel %vm52, %v48, %v46
  %v54 = vsel %vm52, %v49, %v47
  %v55 = vsel %vm52, %v46, %v48
  %v56 = vsel %vm52, %v47, %v49
  %v57 = vadd.s32 %v37, 128
  %v58 = vadd.s32 %v37, 256
  %v59 = vadd.s32 %v37, 384
  %vm60 = vcmp.lt.s32.totalorder %v37, 0
  %v61 = vsub.s32 0, %v37
  %v62 = vsel %vm60, %v61, %v37
  %v63 = vshrl.u32 %v62, 8
  %v64 = vand.u32 %v62, 255
  %v65 = vsub.s32 0, %v64
  %v66 = vsel %vm60, %v65, %v64
  %vm67 = vcmp.lt.s32.totalorder %v57, 0
  %v68 = vsub.s32 0, %v57
  %v69 = vsel %vm67, %v68, %v57
  %v70 = vshrl.u32 %v69, 8
  %v71 = vand.u32 %v69, 255
  %v72 = vsub.s32 0, %v71
  %v73 = vsel %vm67, %v72, %v71
  %vm74 = vcmp.lt.s32.totalorder %v58, 0
  %v75 = vsub.s32 0, %v58
  %v76 = vsel %vm74, %v75, %v58
  %v77 = vshrl.u32 %v76, 8
  %v78 = vand.u32 %v76, 255
  %v79 = vsub.s32 0, %v78
  %v80 = vsel %vm74, %v79, %v78
  %vm81 = vcmp.lt.s32.totalorder %v59, 0
  %v82 = vsub.s32 0, %v59
  %v83 = vsel %vm81, %v82, %v59
  %v84 = vshrl.u32 %v83, 8
  %v85 = vand.u32 %v83, 255
  %v86 = vsub.s32 0, %v85
  %v87 = vsel %vm81, %v86, %v85
  %vm88 = vcmp.ne.s32.totalorder %v66, 0
  %vm89 = vcmp.ne.s32.totalorder %v73, 0
  %vm90 = vcmp.ne.s32.totalorder %v80, 0
  %vm91 = vcmp.ne.s32.totalorder %v87, 0
  %vm92 = vcmp.lt.s32.totalorder %v66, 0
  %vm93 = vcmp.lt.s32.totalorder %v73, 0
  %vm94 = vcmp.lt.s32.totalorder %v80, 0
  %vm95 = vcmp.lt.s32.totalorder %v87, 0
  %vm96 = vmand %vm92, %vm88
  %vm97 = vmand %vm93, %vm89
  %vm98 = vmand %vm94, %vm90
  %vm99 = vmand %vm95, %vm91
  %v100 = vadd.s32 %v66, 256
  %v101 = vadd.s32 %v73, 256
  %v102 = vadd.s32 %v80, 256
  %v103 = vadd.s32 %v87, 256
  %v104 = vsel %vm96, %v100, %v66
  %v105 = vsel %vm97, %v101, %v73
  %v106 = vsel %vm98, %v102, %v80
  %v107 = vsel %vm99, %v103, %v87
  %s108 = sld [smem:[#allocation3 + $0x1]]
  %v109 = vstv %s108
  %vm110 = vcmp.ge.s32.totalorder %v104, %v109
  %vm111 = vcmp.ge.s32.totalorder %v105, %v109
  %vm112 = vcmp.ge.s32.totalorder %v106, %v109
  %vm113 = vcmp.ge.s32.totalorder %v107, %v109
  %s114 = sld [smem:[#allocation3 + $0x2]]
  %v115 = vstv %s114
  %vm116 = vcmp.lt.s32.totalorder %v104, %v115
  %vm117 = vcmp.lt.s32.totalorder %v105, %v115
  %vm118 = vcmp.lt.s32.totalorder %v106, %v115
  %vm119 = vcmp.lt.s32.totalorder %v107, %v115
  %vm120 = vmand %vm110, %vm116
  %vm121 = vmand %vm111, %vm117
  %vm122 = vmand %vm112, %vm118
  %vm123 = vmand %vm113, %vm119
  %v124 = vsel %vm120, %v53, -13.815511
  %v125 = vsel %vm121, %v54, -13.815511
  %v126 = vsel %vm122, %v55, -13.815511
  %v127 = vsel %vm123, %v56, -13.815511
  %v132 = vcombine.low %v124, %v125
  %v133 = vcombine.low %v126, %v127
  %136 = vst [vmem:[%s2] sm:$0xff] %v132
  %137 = vst [vmem:[%s2 + $0x8] sm:$0xff] %v133
  // Predicated region
  $region6: #{mel_pitch_shift.1} parent=0 // pred_check
    _
  $region7: #{mel_pitch_shift.1} parent=0 // pred_check_branch
    %139 = sbr.rel (0) target = $region9
  $region8: #{mel_pitch_shift.1} parent=0 // pred_region
    _
  $region9: #{mel_pitch_shift.1} parent=0 // pred_fallthru
    _
  // Predicated region
  $region10: #{mel_pitch_shift.1} parent=0 // pred_check
    _
  $region11: #{mel_pitch_shift.1} parent=0 // pred_check_branch
    %141 = sbr.rel (0) target = $region13
  $region12: #{mel_pitch_shift.1} parent=0 // pred_region
    _
  $region13: #{mel_pitch_shift.1} parent=0 // pred_fallthru
    _

</llo_original>
